<compile_context>
chip_gen: v7x
topology: tpu7x:2x2x1
jax: 0.10.0
libtpu: 0.0.40
codegen_flags: <defaults>
</compile_context>

<pallas_src>
import functools

import numpy as np
import jax
import jax.numpy as jnp
from jax.experimental import pallas as pl
from jax.experimental.pallas import tpu as pltpu


def _round_up(x, m):
    return ((x + m - 1) // m) * m


# Bit layout of the packed per-atom int32 word:
#   bits [0..9]   element (atomic number, must be < 1024)
#   bit  [10]     reactant-subgraph mask (1 = reactant, 0 = product)
#   bits [11..30] graph id (batch)
_ELEM_BITS = 10
_ELEM_MASK = (1 << _ELEM_BITS) - 1
_BATCH_SHIFT = _ELEM_BITS + 1
_PAD_BATCH = 1 << 19                       # sentinel graph id; never matches
_PAD_PACKED = _PAD_BATCH << _BATCH_SHIFT   # == 2**30, fits int32


def _change_elems_kernel(atoms_ref, species_ref, out_ref):
    """One grid step: one (g_tile graphs, tile_n atoms) tile.

    atoms_ref   : (1, tile_n) int32   bit-packed  batch<<11 | mask<<10 | elem
    species_ref : (s_pad, 1)  int32   atomic-number table (pad = -1)
    out_ref     : (g_tile, s_pad) f32 accumulated (product - reactant) counts
    """
    gi = pl.program_id(0)          # graph-tile index ("parallel")
    k = pl.program_id(1)           # atom-tile / reduction index ("arbitrary")

    g_tile, _ = out_ref.shape
    tile_n = atoms_ref.shape[1]

    packed = atoms_ref[...]                          # (1, TN) int32
    elems = packed & _ELEM_MASK                      # (1, TN)
    mask_r = (packed >> _ELEM_BITS) & 1              # (1, TN)
    batch = packed >> _BATCH_SHIFT                   # (1, TN); pad -> 2**19

    # +1 for product atoms, -1 for reactant atoms (f32; cheap, S_pad rows only).
    sign = jnp.where(mask_r == 1, -1.0, 1.0)         # (1, TN) f32

    # Graph one-hot (0/1): A[g, n] = [batch(n) == gi*g_tile + g].
    # Padding is neutralized here (sentinel batch never matches).
    rel = batch - gi * g_tile                        # (1, TN)
    g_iota = jax.lax.broadcasted_iota(jnp.int32, (g_tile, tile_n), 0)
    a_gn = (g_iota == rel).astype(jnp.bfloat16)      # (g_tile, TN)

    # Signed species one-hot (only s_pad = 8-ish rows):
    #   E[s, n] = sign(n) * [elems(n) == species(s)]
    e_sn = jnp.where(species_ref[...] == elems, sign, 0.0).astype(jnp.bfloat16)

    # change[g, s] += sum_n A[g, n] * E[s, n]   (MXU, f32 accumulation;
    # q@k^T-style orientation: LHS canonical, only the tiny RHS transposed).
    contrib = jax.lax.dot_general(
        a_gn, e_sn,
        dimension_numbers=(((1,), (1,)), ((), ())),
        preferred_element_type=jnp.float32)          # (g_tile, s_pad)

    @pl.when(k == 0)
    def _init():
        out_ref[...] = jnp.zeros_like(out_ref)

    out_ref[...] += contrib


@functools.partial(
    jax.jit,
    static_argnames=("num_graphs", "s", "n_pad", "g_pad", "g_tile",
                     "tile_n", "s_pad"))
def _run_change_elems(elems, batch, mask_r, atomic_numbers, *,
                      num_graphs, s, n_pad, g_pad, g_tile, tile_n, s_pad):
    n = elems.shape[0]

    # One fused packing expression + pad (no full-slab read-modify-writes).
    packed = ((batch.astype(jnp.int32) << _BATCH_SHIFT)
              | (mask_r.astype(jnp.int32) << _ELEM_BITS)
              | (elems.astype(jnp.int32) & _ELEM_MASK))
    packed = jnp.pad(packed, (0, n_pad - n), constant_values=_PAD_PACKED)
    atoms = packed.reshape(1, n_pad)

    species_p = jnp.pad(atomic_numbers.astype(jnp.int32), (0, s_pad - s),
                        constant_values=-1).reshape(s_pad, 1)

    out = pl.pallas_call(
        _change_elems_kernel,
        out_shape=jax.ShapeDtypeStruct((g_pad, s_pad), jnp.float32),
        grid=(g_pad // g_tile, n_pad // tile_n),
        in_specs=[
            # Atom stream: independent of the graph tile, tiled along the
            # reduction axis only.
            pl.BlockSpec((1, tile_n), lambda gi, k: (0, k)),
            # Tiny species table, same block every step.
            pl.BlockSpec((s_pad, 1), lambda gi, k: (0, 0)),
        ],
        # Output block resident across the reduction axis (accumulator).
        out_specs=pl.BlockSpec((g_tile, s_pad), lambda gi, k: (gi, 0)),
        compiler_params=pltpu.CompilerParams(
            dimension_semantics=("parallel", "arbitrary")),
    )(atoms, species_p)

    # Drop padding; drop species 0 ("X"), matching `change_el[1:]` in PyTorch.
    return out[:num_graphs, 1:s]


def get_change_n_elems_pallas(elems, batch, mask_r, atomic_numbers, num_graphs,
                              *, tile_n=None, g_tile=None):
    """Pallas equivalent of BaseDQN.get_change_n_elems.

    elems          : (N,) int   atomic numbers per atom (must be in [0, 1024))
    batch          : (N,) int   graph id per atom (0..num_graphs-1)
    mask_r         : (N,) bool  True = reactant atom (subgraph mask)
    atomic_numbers : (S,) int   species table; index 0 is the dummy "X"
    returns        : (num_graphs, S-1) float32
    """
    n = int(elems.shape[0])
    s = int(atomic_numbers.shape[0])
    num_graphs = int(num_graphs)

    an_host = np.asarray(atomic_numbers)
    assert (an_host >= 0).all() and (an_host < (1 << _ELEM_BITS)).all(), \
        "atomic numbers must be in [0, 1024) for the bit-packed kernel"
    assert 0 < num_graphs < _PAD_BATCH, "num_graphs out of packing range"

    # Graph tile: whole batch in one tile up to 128 graphs; above that use
    # 128-row tiles so the 'parallel' axis has >=2 steps (v7x megacore).
    if g_tile is None:
        g_tile = min(_round_up(num_graphs, 8), 128)
    assert g_tile % 8 == 0
    g_pad = _round_up(num_graphs, g_tile)

    # Atom (reduction) tile: fat, to amortize the ~600-cycle grid-step
    # overhead, but bounded so (g_tile, tile_n) one-hot intermediates stay
    # well under the VMEM limit (also on v7x's 64 MiB part).
    if tile_n is None:
        tile_n = min(_round_up(max(n, 1), 128), 32768)
        budget = (1 << 20) // g_tile                  # <= ~1M one-hot elements
        tile_n = min(tile_n, max(128, (budget // 128) * 128))
    assert tile_n % 128 == 0
    n_pad = _round_up(max(n, 1), tile_n)

    s_pad = _round_up(max(s, 1), 8)

    return _run_change_elems(
        jnp.asarray(elems), jnp.asarray(batch), jnp.asarray(mask_r),
        jnp.asarray(atomic_numbers),
        num_graphs=num_graphs, s=s, n_pad=n_pad, g_pad=g_pad,
        g_tile=g_tile, tile_n=tile_n, s_pad=s_pad)


@functools.partial(jax.jit, static_argnames=("num_graphs",))
def _change_n_elems_xla(elems, batch, mask_r, atomic_numbers, *, num_graphs):
    """Fused XLA fallback for tiny problems (launch overhead >> arithmetic)."""
    sign = jnp.where(jnp.asarray(mask_r, bool), -1.0, 1.0).astype(jnp.float32)
    oh_g = (batch.astype(jnp.int32)[:, None]
            == jnp.arange(num_graphs, dtype=jnp.int32)[None, :]).astype(jnp.float32)
    oh_s = (elems.astype(jnp.int32)[:, None]
            == atomic_numbers.astype(jnp.int32)[None, :]).astype(jnp.float32)
    change = (oh_g * sign[:, None]).T @ oh_s          # (G, S)
    return change[:, 1:]


def get_change_n_elems(elems, batch, mask_r, atomic_numbers, num_graphs,
                       *, force_pallas=False):
    n = int(elems.shape[0])
    if force_pallas or n >= 2048 or int(num_graphs) > 8:
        return get_change_n_elems_pallas(elems, batch, mask_r,
                                         atomic_numbers, num_graphs)
    return _change_n_elems_xla(
        jnp.asarray(elems), jnp.asarray(batch), jnp.asarray(mask_r),
        jnp.asarray(atomic_numbers), num_graphs=int(num_graphs))


class BaseDQNPallas:
    """Minimal JAX-side mirror of BaseDQN (forward is abstract in PyTorch)."""

    def __init__(self, atomic_numbers, cutoff=5.0):
        self.atomic_numbers = jnp.asarray(atomic_numbers, jnp.int32)
        self.cutoff = float(cutoff)
        self.kb = 8.617e-5

    def get_cutoff(self):
        return self.cutoff

    def get_change_n_elems(self, data, force_pallas=False):
        return get_change_n_elems(
            data["elems"], data["batch"], data["mask_r"],
            self.atomic_numbers, data["num_graphs"], force_pallas=force_pallas)


def _reference_change_n_elems(elems, batch, mask_r, atomic_numbers, num_graphs):
    elems = np.asarray(elems)
    batch = np.asarray(batch)
    mask_r = np.asarray(mask_r).astype(bool)
    out = np.zeros((num_graphs, len(atomic_numbers)), np.float32)
    for g in range(num_graphs):
        for si, sp in enumerate(atomic_numbers):
            prod = np.sum((batch == g) & (~mask_r) & (elems == sp))
            reac = np.sum((batch == g) & (mask_r) & (elems == sp))
            out[g, si] = float(prod) - float(reac)
    return out[:, 1:]


if __name__ == "__main__":
    key = jax.random.PRNGKey(0)
    atomic_numbers = np.array([0, 1, 6, 8], dtype=np.int32)  # "X", H, C, O
    model = BaseDQNPallas(atomic_numbers, cutoff=5.0)

    # Case 1: small batch, forced through the Pallas path (single tile).
    ng1, apg1 = 4, 64
    n1 = ng1 * apg1
    k1, k2, k3, k4 = jax.random.split(key, 4)
    eidx1 = jax.random.randint(k1, (n1,), 1, len(atomic_numbers))
    elems1 = jnp.asarray(atomic_numbers)[eidx1]
    batch1 = jnp.repeat(jnp.arange(ng1, dtype=jnp.int32), apg1)
    mask1 = jax.random.bernoulli(k2, 0.5, (n1,))
    data1 = {"elems": elems1, "batch": batch1, "mask_r": mask1,
             "num_graphs": ng1}

    got1 = jax.block_until_ready(model.get_change_n_elems(data1,
                                                          force_pallas=True))
    exp1 = _reference_change_n_elems(np.asarray(elems1), np.asarray(batch1),
                                     np.asarray(mask1), atomic_numbers, ng1)
    if not np.allclose(np.asarray(got1), exp1):
        raise AssertionError(f"Pallas mismatch:\n{np.asarray(got1)}\nvs\n{exp1}")

    # Case 2: larger batch with small override tiles -> exercises multiple
    # graph tiles (gi > 0) and the accumulating reduction axis (k > 0).
    ng2, apg2 = 16, 64
    n2 = ng2 * apg2
    eidx2 = jax.random.randint(k3, (n2,), 1, len(atomic_numbers))
    elems2 = jnp.asarray(atomic_numbers)[eidx2]
    batch2 = jnp.repeat(jnp.arange(ng2, dtype=jnp.int32), apg2)
    mask2 = jax.random.bernoulli(k4, 0.5, (n2,))
    got2 = jax.block_until_ready(get_change_n_elems_pallas(
        elems2, batch2, mask2, jnp.asarray(atomic_numbers), ng2,
        tile_n=128, g_tile=8))
    exp2 = _reference_change_n_elems(np.asarray(elems2), np.asarray(batch2),
                                     np.asarray(mask2), atomic_numbers, ng2)
    if not np.allclose(np.asarray(got2), exp2):
        raise AssertionError(f"Pallas (tiled) mismatch:\n"
                             f"{np.asarray(got2)}\nvs\n{exp2}")

    # Case 3: auto dispatch at tiny size -> fused XLA fallback.
    got3 = jax.block_until_ready(model.get_change_n_elems(data1))
    if not np.allclose(np.asarray(got3), exp1):
        raise AssertionError(f"XLA fallback mismatch:\n"
                             f"{np.asarray(got3)}\nvs\n{exp1}")

    print("KERNEL_OK")
</pallas_src>

<mosaic_0001>
module attributes {stable_mosaic.version = 11 : i64} {
  func.func @_change_elems_kernel(%arg0: i32, %arg1: i32, %arg2: memref<1x256xi32, #tpu.memory_space<vmem>>, %arg3: memref<8x1xi32, #tpu.memory_space<vmem>>, %arg4: memref<8x8xf32, #tpu.memory_space<vmem>>) attributes {dimension_semantics = [#tpu.dimension_semantics<parallel>, #tpu.dimension_semantics<arbitrary>], iteration_bounds = array<i64: 1, 1>, scalar_prefetch = 0 : i64, scratch_operands = 0 : i64, tpu.core_type = #tpu.core_type<tc>, window_params = [{transform_indices = @transform_0, window_bounds = array<i64: 1, 256>}, {pipeline_mode = #tpu.pipeline_mode<synchronous>, transform_indices = @transform_1, window_bounds = array<i64: 8, 1>}, {transform_indices = @transform_2, window_bounds = array<i64: 8, 8>}]} {
    %c0 = arith.constant 0 : index
    %c0_0 = arith.constant 0 : index
    %0 = vector.load %arg2[%c0, %c0_0] : memref<1x256xi32, #tpu.memory_space<vmem>>, vector<1x256xi32>
    %c1023_i32 = arith.constant 1023 : i32
    %1 = vector.broadcast %c1023_i32 : i32 to vector<1x256xi32>
    %2 = arith.andi %0, %1 : vector<1x256xi32>
    %c10_i32 = arith.constant 10 : i32
    %3 = vector.broadcast %c10_i32 : i32 to vector<1x256xi32>
    %4 = arith.shrsi %0, %3 : vector<1x256xi32>
    %c1_i32 = arith.constant 1 : i32
    %5 = vector.broadcast %c1_i32 : i32 to vector<1x256xi32>
    %6 = arith.andi %4, %5 : vector<1x256xi32>
    %c11_i32 = arith.constant 11 : i32
    %7 = vector.broadcast %c11_i32 : i32 to vector<1x256xi32>
    %8 = arith.shrsi %0, %7 : vector<1x256xi32>
    %c1_i32_1 = arith.constant 1 : i32
    %9 = vector.broadcast %c1_i32_1 : i32 to vector<1x256xi32>
    %10 = arith.cmpi eq, %6, %9 : vector<1x256xi32>
    %cst = arith.constant -1.000000e+00 : f32
    %cst_2 = arith.constant 1.000000e+00 : f32
    %11 = vector.broadcast %cst : f32 to vector<1x256xf32>
    %12 = vector.broadcast %cst_2 : f32 to vector<1x256xf32>
    %13 = arith.select %10, %11, %12 : vector<1x256xi1>, vector<1x256xf32>
    %c8_i32 = arith.constant 8 : i32
    %14 = arith.muli %arg0, %c8_i32 : i32
    %15 = vector.broadcast %14 : i32 to vector<1x256xi32>
    %16 = arith.subi %8, %15 : vector<1x256xi32>
    %17 = tpu.iota {dimensions = array<i32: 0>} : vector<8x256xi32>
    %18 = vector.broadcast %16 : vector<1x256xi32> to vector<8x256xi32>
    %19 = arith.cmpi eq, %17, %18 : vector<8x256xi32>
    %20 = arith.extui %19 : vector<8x256xi1> to vector<8x256xi32>
    %21 = arith.sitofp %20 : vector<8x256xi32> to vector<8x256xf32>
    %22 = arith.truncf %21 : vector<8x256xf32> to vector<8x256xbf16>
    %c0_3 = arith.constant 0 : index
    %c0_4 = arith.constant 0 : index
    %23 = vector.load %arg3[%c0_3, %c0_4] : memref<8x1xi32, #tpu.memory_space<vmem>>, vector<8x1xi32>
    %24 = vector.broadcast %23 : vector<8x1xi32> to vector<8x256xi32>
    %25 = vector.broadcast %2 : vector<1x256xi32> to vector<8x256xi32>
    %26 = arith.cmpi eq, %24, %25 : vector<8x256xi32>
    %cst_5 = arith.constant 0.000000e+00 : f32
    %27 = vector.shape_cast %13 : vector<1x256xf32> to vector<1x256xf32>
    %28 = vector.broadcast %27 : vector<1x256xf32> to vector<8x256xf32>
    %29 = vector.broadcast %cst_5 : f32 to vector<8x256xf32>
    %30 = arith.select %26, %28, %29 : vector<8x256xi1>, vector<8x256xf32>
    %31 = arith.truncf %30 : vector<8x256xf32> to vector<8x256xbf16>
    %cst_6 = arith.constant dense<0.000000e+00> : vector<8x8xf32>
    %32 = tpu.matmul %22, %31, %cst_6 {dimension_numbers = #tpu.dot_dimension_numbers<[1], [1], [0], [0], [0, 0, 1, 0], [], []>} : vector<8x256xbf16>, vector<8x256xbf16>, vector<8x8xf32> -> vector<8x8xf32>
    %c0_i32 = arith.constant 0 : i32
    %33 = arith.cmpi eq, %arg1, %c0_i32 : i32
    %34 = arith.extui %33 : i1 to i32
    %c0_i32_7 = arith.constant 0 : i32
    %35 = arith.cmpi ne, %34, %c0_i32_7 : i32
    scf.if %35 {
      %cst_12 = arith.constant 0.000000e+00 : f32
      %39 = vector.broadcast %cst_12 : f32 to vector<8x8xf32>
      %c0_13 = arith.constant 0 : index
      %c0_14 = arith.constant 0 : index
      %40 = vector.load %arg4[%c0_13, %c0_14] : memref<8x8xf32, #tpu.memory_space<vmem>>, vector<8x8xf32>
      tpu.vector_store %arg4[%c0_13, %c0_14], %39 {strides = array<i32>} : memref<8x8xf32, #tpu.memory_space<vmem>>, vector<8x8xf32>,
    } else {
    }
    %c0_8 = arith.constant 0 : index
    %c0_9 = arith.constant 0 : index
    %36 = vector.load %arg4[%c0_8, %c0_9] : memref<8x8xf32, #tpu.memory_space<vmem>>, vector<8x8xf32>
    %37 = arith.addf %36, %32 : vector<8x8xf32>
    %c0_10 = arith.constant 0 : index
    %c0_11 = arith.constant 0 : index
    %38 = vector.load %arg4[%c0_10, %c0_11] : memref<8x8xf32, #tpu.memory_space<vmem>>, vector<8x8xf32>
    tpu.vector_store %arg4[%c0_10, %c0_11], %37 {strides = array<i32>} : memref<8x8xf32, #tpu.memory_space<vmem>>, vector<8x8xf32>,
    return
  }
  func.func @transform_0(%arg0: i32, %arg1: i32) -> (i32, i32) {
    %c0_i32 = arith.constant 0 : i32
    %c0_i32_0 = arith.constant 0 : i32
    return %c0_i32, %arg1 : i32, i32
  }
  func.func @transform_1(%arg0: i32, %arg1: i32) -> (i32, i32) {
    %c0_i32 = arith.constant 0 : i32
    %c0_i32_0 = arith.constant 0 : i32
    %c0_i32_1 = arith.constant 0 : i32
    return %c0_i32, %c0_i32_0 : i32, i32
  }
  func.func @transform_2(%arg0: i32, %arg1: i32) -> (i32, i32) {
    %c0_i32 = arith.constant 0 : i32
    %c0_i32_0 = arith.constant 0 : i32
    return %arg0, %c0_i32 : i32, i32
  }
}

</mosaic_0001>

<llo_original>
// kernel: _run_change_elems.1
$region0: #{_run_change_elems.1}
  #allocation0 [shape = 'u32[]', space=smem, size = 0x4, offset = 0x4, fixed_abs, tag = 'smem constant byte address 0x4 - core index']
  #allocation1 [shape = 'u32[144,128]{1,0:T(1,128)}', space=vmem, size = 0x12000, scoped, tag = 'internal scratch']
  %s0 = inlined_call_operand.vmem [shape: s32[1,256], index: 0, kind: input, shape index: {}]
  %s1 = inlined_call_operand.vmem [shape: s32[8,1], index: 1, kind: input, shape index: {}]
  %s2 = inlined_call_operand.vmem [shape: f32[8,8], index: 2, kind: output, shape index: {}]
  %s3 = sld [smem:[#allocation0]]
  $region22: #{_run_change_elems.1} parent=0
    _
  %s5 = ssub.s32 1, %s3
  %s6 = scalar_select 0, %s5, %s3
  // Predicated region
  $region2: #{_run_change_elems.1} parent=0 // pred_check
    _
  $region3: #{_run_change_elems.1} parent=0 // pred_check_branch
    %8 = sbr.rel (0) target = $region5
  $region4: #{_run_change_elems.1} parent=0 // pred_region
    _
  $region5: #{_run_change_elems.1} parent=0 // pred_fallthru
    _
  // Predicated region
  $region6: #{_run_change_elems.1} parent=0 // pred_check
    _
  $region7: #{_run_change_elems.1} parent=0 // pred_check_branch
    %10 = sbr.rel (0) target = $region9
  $region8: #{_run_change_elems.1} parent=0 // pred_region
    _
  $region9: #{_run_change_elems.1} parent=0 // pred_fallthru
    _
  %v12 = vld [vmem:[%s0] sm:$0x3]
  %v13 = vand.u32 %v12, 1023
  %v14 = vshra.s32 %v12, 10
  %v15 = vand.u32 %v14, 1
  %v16 = vshra.s32 %v12, 11
  %vm17 = vcmp.eq.s32.totalorder %v15, 1
  %v18 = vsel %vm17, -1.0, 1.0
  %s19 = smul.u32 0, 8
  %v20 = vstv %s19
  %v21 = vsub.s32 %v16, %v20
  %v22 = vlaneseq
  %v23 = vshrl.u32 %v22, 7
  %v24 = vlaneseq
  %v25 = vshrl.u32 %v24, 7
  %v26 = vsub.s32 0, %v25
  %v27 = vrot.slane %v21, %v26
  %v28 = vlaneseq
  %v29 = vshrl.u32 %v28, 7
  %v30 = vsub.s32 1, %v29
  %v31 = vrot.slane %v21, %v30
  %vm32 = vcmp.eq.s32.totalorder %v23, %v27
  %vm33 = vcmp.eq.s32.totalorder %v23, %v31
  %v34 = vsel %vm32, 1, 0
  %v35 = vsel %vm33, 1, 0
  %v36 = vcvt.s32.f32 %v34
  %v37 = vcvt.s32.f32 %v35
  %v38 = vpack.c.bf16 %v36, %v36
  %v39 = vpack.c.bf16 %v37, %v37
  %v40 = vld [vmem:[%s1] sm:$0xff]
  %41 = vset.pattern.permute.xlu0 0
  %42 = vperm.xlu0 %41, %v40
  %v43 = vpop.permute.xlu0 %42
  %v44 = vlaneseq
  %v45 = vshrl.u32 %v44, 7
  %v46 = vsub.s32 0, %v45
  %v47 = vrot.slane %v13, %v46
  %v48 = vlaneseq
  %v49 = vshrl.u32 %v48, 7
  %v50 = vsub.s32 1, %v49
  %v51 = vrot.slane %v13, %v50
  %vm52 = vcmp.eq.s32.totalorder %v43, %v47
  %vm53 = vcmp.eq.s32.totalorder %v43, %v51
  %v55 = vlaneseq
  %v56 = vshrl.u32 %v55, 7
  %v57 = vsub.s32 0, %v56
  %v58 = vrot.slane %v18, %v57
  %v59 = vlaneseq
  %v60 = vshrl.u32 %v59, 7
  %v61 = vsub.s32 1, %v60
  %v62 = vrot.slane %v18, %v61
  %v65 = vsel %vm52, %v58, 0.0
  %v66 = vsel %vm53, %v62, 0.0
  %v67 = vpack.c.bf16 %v65, %v65
  %v68 = vpack.c.bf16 %v66, %v66
  %69 = vmatprep.subr.bf16.mxu0 %v68
  %70 = vmatpush1.bf16.xpose.msra.mxu0 %v67
  %71 = vmatprep.subr.bf16.mxu0 0
  %72 = vmatpush1.bf16.xpose.msra.mxu0 0
  %73 = vmatprep.subr.bf16.mxu0 0
  %74 = vmatpush1.bf16.xpose.msra.mxu0 0
  %75 = vmatprep.subr.bf16.mxu0 0
  %76 = vmatpush1.bf16.xpose.msra.mxu0 0
  %77 = vmatprep.subr.bf16.mxu0 0
  %78 = vmatpush1.bf16.xpose.msra.mxu0 0
  %79 = vmatprep.subr.bf16.mxu0 0
  %80 = vmatpush1.bf16.xpose.msra.mxu0 0
  %81 = vmatprep.subr.bf16.mxu0 0
  %82 = vmatpush1.bf16.xpose.msra.mxu0 0
  %83 = vmatprep.subr.bf16.mxu0 0
  %84 = vmatpush1.bf16.xpose.msra.mxu0 0
  %85 = vmatprep.subr.bf16.mxu0 0
  %86 = vmatpush1.bf16.xpose.msra.mxu0 0
  %87 = vmatprep.subr.bf16.mxu0 0
  %88 = vmatpush1.bf16.xpose.msra.mxu0 0
  %89 = vmatprep.subr.bf16.mxu0 0
  %90 = vmatpush1.bf16.xpose.msra.mxu0 0
  %91 = vmatprep.subr.bf16.mxu0 0
  %92 = vmatpush1.bf16.xpose.msra.mxu0 0
  %93 = vmatprep.subr.bf16.mxu0 0
  %94 = vmatpush1.bf16.xpose.msra.mxu0 0
  %95 = vmatprep.subr.bf16.mxu0 0
  %96 = vmatpush1.bf16.xpose.msra.mxu0 0
  %97 = vmatprep.subr.bf16.mxu0 0
  %98 = vmatpush1.bf16.xpose.msra.mxu0 0
  %99 = vmatprep.subr.bf16.mxu0 0
  %100 = vmatpush1.bf16.xpose.msra.mxu0 0
  %101 = vmatprep.mubr.bf16.mxu0 %v39
  %102 = vmatmul.mubr.bf16.gmra.mrb[0].mxu0 %v38
  %v103 = vpop.f32.mrb[0].mxu0
  %v104 = vadd.f32 0.0, %v103
  %v105 = vpop.f32.mrb[0].mxu0
  %v106 = vpop.f32.mrb[0].mxu0
  %v107 = vpop.f32.mrb[0].mxu0
  %108 = vdwg.mxu0
  %p109 = scmp.eq.s32.totalorder 0, 0
  // Predicated region
  $region10: #{_run_change_elems.1} parent=0 // pred_check
    %p110 = pneg %p109
  $region11: #{_run_change_elems.1} parent=0 // pred_check_branch
    %112 = sbr.rel (%p110) target = $region13
  $region12: #{_run_change_elems.1} parent=0 // pred_region
    %vm113 = vcmask 64512
    %114 = vst.msk [vmem:[%s2] sm:$0xff] %vm113, 0.0
  $region13: #{_run_change_elems.1} parent=0 // pred_fallthru
    _
  %v115 = vld [vmem:[%s2] sm:$0xff]
  %v116 = vadd.f32 %v115, %v104
  %vm117 = vcmask 64512
  %118 = vst.msk [vmem:[%s2] sm:$0xff] %vm117, %v116
  // Predicated region
  $region14: #{_run_change_elems.1} parent=0 // pred_check
    _
  $region15: #{_run_change_elems.1} parent=0 // pred_check_branch
    %120 = sbr.rel (0) target = $region17
  $region16: #{_run_change_elems.1} parent=0 // pred_region
    _
  $region17: #{_run_change_elems.1} parent=0 // pred_fallthru
    _
  // Predicated region
  $region18: #{_run_change_elems.1} parent=0 // pred_check
    _
  $region19: #{_run_change_elems.1} parent=0 // pred_check_branch
    %122 = sbr.rel (0) target = $region21
  $region20: #{_run_change_elems.1} parent=0 // pred_region
    _
  $region21: #{_run_change_elems.1} parent=0 // pred_fallthru
    _

</llo_original>
